<compile_context>
chip_gen: v7x
topology: tpu7x:2x2x1
jax: 0.10.0
libtpu: 0.0.40
codegen_flags: <defaults>
</compile_context>

<pallas_src>
import functools

import jax
import jax.numpy as jnp
from jax.experimental import pallas as pl
from jax.experimental.pallas import tpu as pltpu


def _image_embed_kernel(id_ref, x_ref, emb_ref, o_ref, *, num_channels):
    # x_ref:   (1, C,   tt, HW)  input slab for (batch b, time-chunk t)
    # emb_ref: (1, 1,   HW)      embedding image gathered for this batch's id
    # o_ref:   (1, C+1, tt, HW)  output slab
    del id_ref  # only used inside the index_maps (scalar prefetch)

    # Pass-through copy of the original channels: one contiguous (C, tt, HW)
    # lane-dense store.
    o_ref[0, 0:num_channels, :, :] = x_ref[0, :, :, :]

    # Broadcast the gathered embedding image across the time chunk into the
    # extra channel with a single lane-dense store.
    tt = o_ref.shape[2]
    hw = o_ref.shape[3]
    emb = emb_ref[0, :, :].astype(o_ref.dtype)            # (1, HW)
    o_ref[0, num_channels, :, :] = jnp.broadcast_to(emb, (tt, hw))


def _choose_time_chunk(C, T, HW, itemsize, budget_bytes=24 << 20):
    """Largest time chunk whose double-buffered (x + out) blocks fit the budget."""
    per_t = (2 * C + 1) * HW * itemsize * 2  # x + out blocks, double-buffered
    max_tt = max(1, budget_bytes // per_t)
    if max_tt >= T:
        return T
    # Prefer a divisor of T that is a multiple of 8 (sublane tile constraint
    # on the second-to-last block dim); otherwise fall back to the full T
    # (the raised VMEM limit handles it).
    for tt in range(min(max_tt, T), 0, -1):
        if T % tt == 0 and tt % 8 == 0:
            return tt
    return T


def image_embedding_forward(x, ids, embed_weight):
    """x: (B, C, T, H, W); ids: (B,) int; embed_weight: (num_embeddings, H*W)."""
    B, C, T, H, W = x.shape
    HW = H * W
    N = embed_weight.shape[0]
    itemsize = jnp.dtype(x.dtype).itemsize

    # Guard against silent OOB DMA from a bad id (the data-dependent gather
    # has no runtime bounds check).
    ids = jnp.clip(ids.astype(jnp.int32), 0, N - 1)

    # Lane-dense layouts: trailing dim is H*W (layout plumbing only; these
    # reshapes are contiguous / free).
    x_flat = x.reshape(B, C, T, HW)
    emb_tbl = embed_weight.astype(x.dtype).reshape(N, 1, HW)

    tt = _choose_time_chunk(C, T, HW, itemsize)
    n_t = T // tt

    grid_spec = pltpu.PrefetchScalarGridSpec(
        num_scalar_prefetch=1,
        grid=(B, n_t),
        in_specs=[
            # x slab for (batch b, time-chunk t)
            pl.BlockSpec((1, C, tt, HW), lambda b, t, id_ref: (b, 0, t, 0)),
            # embedding row gathered by id[b]; constant across the inner t
            # axis, so Pallas skips the re-fetch.
            pl.BlockSpec((1, 1, HW), lambda b, t, id_ref: (id_ref[b], 0, 0)),
        ],
        out_specs=pl.BlockSpec(
            (1, C + 1, tt, HW), lambda b, t, id_ref: (b, 0, t, 0)
        ),
    )

    kernel = functools.partial(_image_embed_kernel, num_channels=C)

    # VMEM estimate: (x + out) blocks double-buffered plus slack; clamp so it
    # is safe on v7x (64 MiB physical) while still allowing big blocks on
    # v5e/v6e (128 MiB physical, small default scoped limit).
    block_bytes = (2 * C + 1) * tt * HW * itemsize
    vmem_limit = int(min(max(2 * 2 * block_bytes + (1 << 20), 16 << 20), 48 << 20))

    # Purely memory-bound: tell the XLA scheduler how many bytes move.
    bytes_accessed = (
        B * C * T * HW * itemsize            # read x
        + B * HW * itemsize                  # read gathered embedding rows
        + B * (C + 1) * T * HW * itemsize    # write out
    )

    out_flat = pl.pallas_call(
        kernel,
        grid_spec=grid_spec,
        out_shape=jax.ShapeDtypeStruct((B, C + 1, T, HW), x.dtype),
        compiler_params=pltpu.CompilerParams(
            # Every (b, t) grid point writes a distinct output block -> both
            # axes are safe to shard across TensorCores.
            dimension_semantics=("parallel", "parallel"),
            vmem_limit_bytes=vmem_limit,
        ),
        cost_estimate=pl.CostEstimate(
            flops=0, transcendentals=0, bytes_accessed=bytes_accessed
        ),
    )(ids, x_flat, emb_tbl)

    return out_flat.reshape(B, C + 1, T, H, W)


if __name__ == "__main__":
    # Small deterministic config consistent with the module.
    num_embeddings = 10
    sequence_length = 8     # T
    image_size_pixels = 16  # H = W
    B, C = 2, 4
    H = W = image_size_pixels
    T = sequence_length

    key = jax.random.PRNGKey(0)
    kx, ke, kid = jax.random.split(key, 3)

    x = jax.random.normal(kx, (B, C, T, H, W), dtype=jnp.float32)
    # nn.Embedding default init ~ N(0, 1); weight shape (num_embeddings, H*W)
    embed_weight = jax.random.normal(ke, (num_embeddings, H * W), dtype=jnp.float32)
    ids = jax.random.randint(kid, (B,), 0, num_embeddings, dtype=jnp.int32)

    out = image_embedding_forward(x, ids, embed_weight)
    out = jax.block_until_ready(out)

    # Reference check in plain JAX (mirrors the PyTorch forward).
    emb_ref = embed_weight[ids].reshape(B, 1, 1, H, W)
    emb_ref = jnp.broadcast_to(emb_ref, (B, 1, T, H, W))
    ref = jnp.concatenate([x, emb_ref], axis=1)

    assert out.shape == (B, C + 1, T, H, W)
    assert jnp.allclose(out, ref), "mismatch vs reference"
    print("KERNEL_OK")
</pallas_src>

<mosaic_0001>
module attributes {stable_mosaic.version = 11 : i64} {
  func.func @_image_embed_kernel(%arg0: i32, %arg1: i32, %arg2: memref<2xi32, #tpu.memory_space<smem>>, %arg3: memref<1x4x8x256xf32, #tpu.memory_space<vmem>>, %arg4: memref<1x1x256xf32, #tpu.memory_space<vmem>>, %arg5: memref<1x5x8x256xf32, #tpu.memory_space<vmem>>) attributes {dimension_semantics = [#tpu.dimension_semantics<parallel>, #tpu.dimension_semantics<parallel>], iteration_bounds = array<i64: 2, 1>, scalar_prefetch = 1 : i64, scratch_operands = 0 : i64, tpu.core_type = #tpu.core_type<tc>, window_params = [{transform_indices = @transform_0, window_bounds = array<i64: 1, 4, 8, 256>}, {transform_indices = @transform_1, window_bounds = array<i64: 1, 1, 256>}, {transform_indices = @transform_2, window_bounds = array<i64: 1, 5, 8, 256>}]} {
    %c0 = arith.constant 0 : index
    %c0_0 = arith.constant 0 : index
    %c0_1 = arith.constant 0 : index
    %c0_2 = arith.constant 0 : index
    %0 = vector.load %arg3[%c0, %c0_0, %c0_1, %c0_2] : memref<1x4x8x256xf32, #tpu.memory_space<vmem>>, vector<1x4x8x256xf32>
    %1 = vector.shape_cast %0 : vector<1x4x8x256xf32> to vector<4x8x256xf32>
    %c0_3 = arith.constant 0 : index
    %c0_4 = arith.constant 0 : index
    %c0_5 = arith.constant 0 : index
    %c0_6 = arith.constant 0 : index
    %2 = vector.load %arg5[%c0_3, %c0_4, %c0_5, %c0_6] : memref<1x5x8x256xf32, #tpu.memory_space<vmem>>, vector<1x4x8x256xf32>
    %3 = vector.shape_cast %2 : vector<1x4x8x256xf32> to vector<4x8x256xf32>
    %4 = vector.shape_cast %1 : vector<4x8x256xf32> to vector<1x4x8x256xf32>
    tpu.vector_store %arg5[%c0_3, %c0_4, %c0_5, %c0_6], %4 {strides = array<i32>} : memref<1x5x8x256xf32, #tpu.memory_space<vmem>>, vector<1x4x8x256xf32>,
    %c0_7 = arith.constant 0 : index
    %c0_8 = arith.constant 0 : index
    %c0_9 = arith.constant 0 : index
    %5 = vector.load %arg4[%c0_7, %c0_8, %c0_9] : memref<1x1x256xf32, #tpu.memory_space<vmem>>, vector<1x1x256xf32>
    %6 = vector.shape_cast %5 : vector<1x1x256xf32> to vector<1x256xf32>
    %7 = vector.shape_cast %6 : vector<1x256xf32> to vector<1x256xf32>
    %8 = vector.broadcast %7 : vector<1x256xf32> to vector<8x256xf32>
    %c0_10 = arith.constant 0 : index
    %c4 = arith.constant 4 : index
    %c0_11 = arith.constant 0 : index
    %c0_12 = arith.constant 0 : index
    %9 = vector.load %arg5[%c0_10, %c4, %c0_11, %c0_12] : memref<1x5x8x256xf32, #tpu.memory_space<vmem>>, vector<1x1x8x256xf32>
    %10 = vector.shape_cast %9 : vector<1x1x8x256xf32> to vector<8x256xf32>
    %11 = vector.shape_cast %8 : vector<8x256xf32> to vector<1x1x8x256xf32>
    tpu.vector_store %arg5[%c0_10, %c4, %c0_11, %c0_12], %11 {strides = array<i32>} : memref<1x5x8x256xf32, #tpu.memory_space<vmem>>, vector<1x1x8x256xf32>,
    return
  }
  func.func @transform_0(%arg0: i32, %arg1: i32, %arg2: memref<2xi32, #tpu.memory_space<smem>>) -> (i32, i32, i32, i32) {
    %c0_i32 = arith.constant 0 : i32
    %c0_i32_0 = arith.constant 0 : i32
    %c0_i32_1 = arith.constant 0 : i32
    return %arg0, %c0_i32, %arg1, %c0_i32_0 : i32, i32, i32, i32
  }
  func.func @transform_1(%arg0: i32, %arg1: i32, %arg2: memref<2xi32, #tpu.memory_space<smem>>) -> (i32, i32, i32) {
    %0 = arith.index_cast %arg0 : i32 to index
    %1 = memref.load %arg2[%0] : memref<2xi32, #tpu.memory_space<smem>>
    %c0_i32 = arith.constant 0 : i32
    %c0_i32_0 = arith.constant 0 : i32
    %c0_i32_1 = arith.constant 0 : i32
    return %1, %c0_i32, %c0_i32_0 : i32, i32, i32
  }
  func.func @transform_2(%arg0: i32, %arg1: i32, %arg2: memref<2xi32, #tpu.memory_space<smem>>) -> (i32, i32, i32, i32) {
    %c0_i32 = arith.constant 0 : i32
    %c0_i32_0 = arith.constant 0 : i32
    %c0_i32_1 = arith.constant 0 : i32
    return %arg0, %c0_i32, %arg1, %c0_i32_0 : i32, i32, i32, i32
  }
}

</mosaic_0001>

<llo_original>
// kernel: tpu_custom_call.1
$region0: #{tpu_custom_call.1}
  #allocation0 [shape = 'u32[]', space=smem, size = 0x4, offset = 0x4, fixed_abs, tag = 'smem constant byte address 0x4 - core index']
  #allocation1 [shape = 'u32[144,128]{1,0:T(1,128)}', space=vmem, size = 0x12000, scoped, tag = 'internal scratch']
  #allocation2 [shape = 's32[1]{0}', space=sflag, size = 0x4, scoped, tag = 'scoped memory for tpu_custom_call.1']
  #allocation3 [shape = 'u8[512]{0}', space=smem, size = 0x200, scoped, tag = 'prefetched SMEM operand 0']
  %s0 = inlined_call_operand.hbm [shape: s32[2], index: 0, kind: input, shape index: {}]
  %s1 = inlined_call_operand.hbm [shape: f32[2,4,8,256], index: 1, kind: input, shape index: {}]
  %s2 = inlined_call_operand.hbm [shape: f32[10,1,256], index: 2, kind: input, shape index: {}]
  %s3 = inlined_call_operand.hbm [shape: f32[2,5,8,256], index: 3, kind: output, shape index: {}]
  %s4 = sld [smem:[#allocation0]]
  $region49: #{tpu_custom_call.1} parent=0
    _
  %s6 = ssub.s32 1, %s4
  %s7 = scalar_select 0, %s6, %s4
  %9 = dma.hbm_to_smem %s0, 16, [#allocation3], [#allocation2]
  %10 = dma.done [#allocation2], 16
  %11 = sfence
  $region1: #{tpu_custom_call.1} parent=0
    #allocation4 [shape = 'u8[65536]{0}', space=vmem, size = 0x10000, scoped, tag = 'input window, operand 1']
    #allocation5 [shape = 's32[2]{0}', space=sflag, size = 0x8, scoped, tag = 'scoped memory for tpu_custom_call.1']
    #allocation6 [shape = 's32[2]{0}', space=sflag, size = 0x8, scoped, tag = 'scoped memory for tpu_custom_call.1']
    #allocation7 [shape = 'u8[2048]{0}', space=vmem, size = 0x800, scoped, tag = 'input window, operand 2']
    #allocation8 [shape = 's32[2]{0}', space=sflag, size = 0x8, scoped, tag = 'scoped memory for tpu_custom_call.1']
    #allocation9 [shape = 'u8[81920]{0}', space=vmem, size = 0x14000, scoped, tag = 'output window, operand 0']
    %12 = vsyncpa [#allocation5], 0
    %s13 = scalar_lea.sflag [#allocation5], 1
    %14 = vsyncpa %s13, 0
    %15 = vsyncpa [#allocation8], 0
    %s16 = scalar_lea.sflag [#allocation8], 1
    %17 = vsyncpa %s16, 0
    %18 = vsyncpa [#allocation6], 0
    %s19 = scalar_lea.sflag [#allocation6], 1
    %20 = vsyncpa %s19, 0
    loop: start=0, step=1, limit=4
    $region2: #{tpu_custom_call.1} parent=1 // loop_pre_header
      _
    $region3: #{tpu_custom_call.1} parent=1 // loop_header
      %s22 = sphi 0, %s26
      %p23 = scmp.ge.s32.totalorder %s22, 4
      %s29 = sphi 0, %s41
      %s30 = sphi 0, %s37
      %s31 = sphi 0, %s29
      %s32 = sphi 0, %s30
      %s33 = sphi 0, %s31
      %s34 = sphi 0, %s32
      %s46 = sphi 0, %s48
      %s49 = sphi 0, %s46
      %s50 = sphi 0, %s49
      %s66 = sphi 0, %s50
      %s74 = sphi 0, %s76
      %s77 = sphi 0, %s74
      %s78 = sphi 0, %s77
      %s94 = sphi 0, %s78
      %s102 = sphi 0, %s104
      %s105 = sphi 0, %s102
      %s106 = sphi 0, %s105
      %s122 = sphi 0, %s106
    $region4: #{tpu_custom_call.1} parent=1 // loop_header_branch
      %25 = sbr.rel (%p23) target = $region8
    $region5: #{tpu_custom_call.1} parent=1 // loop_body
      %s27 = ssub.s32 %s22, 1
      %s28 = ssub.s32 %s22, 2
      %s35 = sadd.s32 1, %s30
      %p36 = scmp.ge.s32.totalorder %s35, 1
      %s37 = scalar_select %p36, 0, %s35
      %s38 = sadd.s32 1, %s29
      %s39 = scalar_select %p36, %s38, %s29
      %p40 = scmp.ge.s32.totalorder %s39, 2
      %s41 = scalar_select %p40, 0, %s39
      %s42 = ssub.s32 %s29, %s41
      %s43 = ssub.s32 %s30, %s37
      %s44 = sor.u32 %s42, %s43
      %p45 = scmp.eq.s32.totalorder %s44, 0
      %s47 = sadd.s32 %s46, 1
      %s48 = scalar_select %p45, %s46, %s47
      %p51 = pneg %p45
      %p52 = scmp.eq.s32.totalorder %s22, 1
      %p53 = por %p51, %p52
      %p54 = scmp.ne.s32.totalorder %s46, %s49
      %p55 = scmp.eq.s32.totalorder %s22, 0
      %p56 = por %p54, %p55
      %p57 = scmp.ne.s32.totalorder %s46, %s49
      %p58 = scmp.eq.s32.totalorder %s27, 1
      %p59 = por %p57, %p58
      %p60 = scmp.ne.s32.totalorder %s49, %s50
      %p61 = scmp.eq.s32.totalorder %s27, 0
      %p62 = por %p60, %p61
      %p63 = scmp.ne.s32.totalorder %s49, %s50
      %p64 = scmp.eq.s32.totalorder %s28, 1
      %p65 = por %p63, %p64
      %p67 = scmp.ne.s32.totalorder %s50, %s66
      %p68 = scmp.eq.s32.totalorder %s28, 0
      %p69 = por %p67, %p68
      %s70 = sld [smem:[#allocation3 + %s29]]
      %s71 = sld [smem:[#allocation3 + %s41]]
      %s72 = ssub.s32 %s70, %s71
      %p73 = scmp.eq.s32.totalorder %s72, 0
      %s75 = sadd.s32 %s74, 1
      %s76 = scalar_select %p73, %s74, %s75
      %p79 = pneg %p73
      %p80 = scmp.eq.s32.totalorder %s22, 1
      %p81 = por %p79, %p80
      %p82 = scmp.ne.s32.totalorder %s74, %s77
      %p83 = scmp.eq.s32.totalorder %s22, 0
      %p84 = por %p82, %p83
      %p85 = scmp.ne.s32.totalorder %s74, %s77
      %p86 = scmp.eq.s32.totalorder %s27, 1
      %p87 = por %p85, %p86
      %p88 = scmp.ne.s32.totalorder %s77, %s78
      %p89 = scmp.eq.s32.totalorder %s27, 0
      %p90 = por %p88, %p89
      %p91 = scmp.ne.s32.totalorder %s77, %s78
      %p92 = scmp.eq.s32.totalorder %s28, 1
      %p93 = por %p91, %p92
      %p95 = scmp.ne.s32.totalorder %s78, %s94
      %p96 = scmp.eq.s32.totalorder %s28, 0
      %p97 = por %p95, %p96
      %s98 = ssub.s32 %s29, %s41
      %s99 = ssub.s32 %s30, %s37
      %s100 = sor.u32 %s98, %s99
      %p101 = scmp.eq.s32.totalorder %s100, 0
      %s103 = sadd.s32 %s102, 1
      %s104 = scalar_select %p101, %s102, %s103
      %p107 = pneg %p101
      %p108 = scmp.eq.s32.totalorder %s22, 1
      %p109 = por %p107, %p108
      %p110 = scmp.ne.s32.totalorder %s102, %s105
      %p111 = scmp.eq.s32.totalorder %s22, 0
      %p112 = por %p110, %p111
      %p113 = scmp.ne.s32.totalorder %s102, %s105
      %p114 = scmp.eq.s32.totalorder %s27, 1
      %p115 = por %p113, %p114
      %p116 = scmp.ne.s32.totalorder %s105, %s106
      %p117 = scmp.eq.s32.totalorder %s27, 0
      %p118 = por %p116, %p117
      %p119 = scmp.ne.s32.totalorder %s105, %s106
      %p120 = scmp.eq.s32.totalorder %s28, 1
      %p121 = por %p119, %p120
      %p123 = scmp.ne.s32.totalorder %s106, %s122
      %p124 = scmp.eq.s32.totalorder %s28, 0
      %p125 = por %p123, %p124
      %p126 = scmp.le.s32.totalorder 1, %s22
      %p127 = scmp.lt.s32.totalorder %s22, 3
      %p128 = pnand %p126, %p127
      %p129 = pneg %p128
      // Predicated region
      $region9: #{tpu_custom_call.1} parent=5 // pred_check
        _
      $region10: #{tpu_custom_call.1} parent=5 // pred_check_branch
        %131 = sbr.rel (%p128) target = $region12
      $region11: #{tpu_custom_call.1} parent=5 // pred_region
        %s132 = ssub.s32 %s22, 1
      $region12: #{tpu_custom_call.1} parent=5 // pred_fallthru
        _
      %p133 = scmp.lt.s32.totalorder %s22, 2
      // Predicated region
      $region13: #{tpu_custom_call.1} parent=5 // pred_check
        %p134 = pneg %p133
      $region14: #{tpu_custom_call.1} parent=5 // pred_check_branch
        %136 = sbr.rel (%p134) target = $region16
      $region15: #{tpu_custom_call.1} parent=5 // pred_region
        // Predicated region
        $region17: #{tpu_custom_call.1} parent=15 // pred_check
          %p137 = pneg %p56
        $region18: #{tpu_custom_call.1} parent=15 // pred_check_branch
          %139 = sbr.rel (%p137) target = $region20
        $region19: #{tpu_custom_call.1} parent=15 // pred_region
          %s140 = sand.u32 %s46, 1
          %s141 = scalar_lea.sflag [#allocation5], %s140
          %s142 = sand.u32 %s46, 1
          %s143 = smul.addr %s142, 64
          %s144 = scalar_lea.vmem [#allocation4], %s143
          %s146 = ssub.s32 1024, 1024
          %147 = vsyncadd %s141, %s146
          %s148 = smul.addr %s30, 2
          %s149 = smul.addr %s29, 8
          %s150 = sadd.s32 %s148, %s149
          %s151 = smul.addr %s150, 128
          %s152 = scalar_lea.hbm %s1, %s151
          %s153 = sshll.u32 %s144, 4
          %s154 = int_to_ptr.vmem [resolvable:$true] %s153
          %159 = dma.hbm_to_vmem [thread:$0]  %s152, 1024, %s154, %s141, 256, 256, 16
        $region20: #{tpu_custom_call.1} parent=15 // pred_fallthru
          _
        // Predicated region
        $region21: #{tpu_custom_call.1} parent=15 // pred_check
          %p160 = pneg %p84
        $region22: #{tpu_custom_call.1} parent=15 // pred_check_branch
          %162 = sbr.rel (%p160) target = $region24
        $region23: #{tpu_custom_call.1} parent=15 // pred_region
          %s163 = sand.u32 %s74, 1
          %s164 = scalar_lea.sflag [#allocation8], %s163
          %s165 = sand.u32 %s74, 1
          %s166 = smul.addr %s165, 2
          %s167 = scalar_lea.vmem [#allocation7], %s166
          %s168 = sld [smem:[#allocation3 + %s29]]
          %s170 = ssub.s32 32, 32
          %171 = vsyncadd %s164, %s170
          %s172 = smul.addr %s168, 2
          %s173 = smul.addr %s172, 16
          %s174 = scalar_lea.hbm %s2, %s173
          %s176 = sshll.u32 %s167, 4
          %s177 = int_to_ptr.vmem [resolvable:$true] %s176
          %179 = dma.hbm_to_vmem [thread:$0]  %s174, 32, %s177, %s164
        $region24: #{tpu_custom_call.1} parent=15 // pred_fallthru
          _
      $region16: #{tpu_custom_call.1} parent=5 // pred_fallthru
        _
      %p180 = scmp.le.s32.totalorder 1, %s22
      %p181 = scmp.lt.s32.totalorder %s22, 3
      %p182 = pnand %p180, %p181
      %p183 = pneg %p182
      // Predicated region
      $region25: #{tpu_custom_call.1} parent=5 // pred_check
        _
      $region26: #{tpu_custom_call.1} parent=5 // pred_check_branch
        %185 = sbr.rel (%p182) target = $region28
      $region27: #{tpu_custom_call.1} parent=5 // pred_region
        %s186 = ssub.s32 %s22, 1
        %s187 = sand.u32 %s49, 1
        %s188 = scalar_lea.sflag [#allocation5], %s187
        %s189 = sand.u32 %s49, 1
        %s190 = smul.addr %s189, 64
        %s191 = scalar_lea.vmem [#allocation4], %s190
        // Predicated region
        $region29: #{tpu_custom_call.1} parent=27 // pred_check
          %p192 = pneg %p62
        $region30: #{tpu_custom_call.1} parent=27 // pred_check_branch
          %194 = sbr.rel (%p192) target = $region32
        $region31: #{tpu_custom_call.1} parent=27 // pred_region
          %195 = dma.done %s188, 1024
        $region32: #{tpu_custom_call.1} parent=27 // pred_fallthru
          _
        %s196 = sand.u32 %s77, 1
        %s197 = scalar_lea.sflag [#allocation8], %s196
        %s198 = sand.u32 %s77, 1
        %s199 = smul.addr %s198, 2
        %s200 = scalar_lea.vmem [#allocation7], %s199
        // Predicated region
        $region33: #{tpu_custom_call.1} parent=27 // pred_check
          %p201 = pneg %p90
        $region34: #{tpu_custom_call.1} parent=27 // pred_check_branch
          %203 = sbr.rel (%p201) target = $region36
        $region35: #{tpu_custom_call.1} parent=27 // pred_region
          %204 = dma.done %s197, 32
        $region36: #{tpu_custom_call.1} parent=27 // pred_fallthru
          _
        %s205 = sand.u32 %s49, 1
        %s206 = scalar_lea.sflag [#allocation5], %s205
        %s207 = sand.u32 %s49, 1
        %s208 = smul.addr %s207, 64
        %s209 = scalar_lea.vmem [#allocation4], %s208
        %p210 = pneg %p62
        %p211 = pneg %p59
        %s212 = sand.u32 %s77, 1
        %s213 = scalar_lea.sflag [#allocation8], %s212
        %s214 = sand.u32 %s77, 1
        %s215 = smul.addr %s214, 2
        %s216 = scalar_lea.vmem [#allocation7], %s215
        %p217 = pneg %p90
        %p218 = pneg %p87
        %p219 = pneg %p118
        %p220 = pneg %p115
        %s221 = sand.u32 %s105, 1
        %s222 = scalar_lea.sflag [#allocation6], %s221
        %s223 = sand.u32 %s105, 1
        %s224 = smul.addr %s223, 80
        %s225 = scalar_lea.vmem [#allocation9], %s224
        %s226 = sld [smem:[#allocation3 + %s31]]
        %v227 = vld [vmem:[%s191] sm:$0xff]
        %v228 = vld [vmem:[%s191 + $0x8] sm:$0xff]
        %v229 = vld [vmem:[%s191 + $0x10] sm:$0xff]
        %v230 = vld [vmem:[%s191 + $0x18] sm:$0xff]
        %v231 = vld [vmem:[%s191 + $0x20] sm:$0xff]
        %v232 = vld [vmem:[%s191 + $0x28] sm:$0xff]
        %v233 = vld [vmem:[%s191 + $0x30] sm:$0xff]
        %v234 = vld [vmem:[%s191 + $0x38] sm:$0xff]
        %235 = vst [vmem:[%s225] sm:$0xff] %v227
        %236 = vst [vmem:[%s225 + $0x8] sm:$0xff] %v228
        %237 = vst [vmem:[%s225 + $0x10] sm:$0xff] %v229
        %238 = vst [vmem:[%s225 + $0x18] sm:$0xff] %v230
        %239 = vst [vmem:[%s225 + $0x20] sm:$0xff] %v231
        %240 = vst [vmem:[%s225 + $0x28] sm:$0xff] %v232
        %241 = vst [vmem:[%s225 + $0x30] sm:$0xff] %v233
        %242 = vst [vmem:[%s225 + $0x38] sm:$0xff] %v234
        %v243 = vld [vmem:[%s200] sm:$0x3]
        %v245 = vlaneseq
        %v246 = vshrl.u32 %v245, 7
        %v247 = vsub.s32 0, %v246
        %v248 = vrot.slane %v243, %v247
        %v249 = vlaneseq
        %v250 = vshrl.u32 %v249, 7
        %v251 = vsub.s32 1, %v250
        %v252 = vrot.slane %v243, %v251
        %s255 = scalar_lea.vmem %s225, 64 [#allocation9]
        %256 = vst [vmem:[%s255] sm:$0xff] %v248
        %257 = vst [vmem:[%s255 + $0x8] sm:$0xff] %v252
        %s258 = sand.u32 %s105, 1
        %s259 = scalar_lea.sflag [#allocation6], %s258
        %s260 = sand.u32 %s105, 1
        %s261 = smul.addr %s260, 80
        %s262 = scalar_lea.vmem [#allocation9], %s261
        // Predicated region
        $region37: #{tpu_custom_call.1} parent=27 // pred_check
          %p263 = pneg %p115
        $region38: #{tpu_custom_call.1} parent=27 // pred_check_branch
          %265 = sbr.rel (%p263) target = $region40
        $region39: #{tpu_custom_call.1} parent=27 // pred_region
          %s267 = ssub.s32 1280, 1280
          %268 = vsyncadd %s259, %s267
          %s269 = smul.addr %s32, 2
          %s270 = smul.addr %s31, 10
          %s271 = sadd.s32 %s269, %s270
          %s272 = smul.addr %s271, 128
          %s273 = scalar_lea.hbm %s3, %s272
          %s274 = sshll.u32 %s262, 4
          %s275 = int_to_ptr.vmem [resolvable:$true] %s274
          %280 = dma.vmem_to_hbm [thread:$0]  %s275, 1280, %s273, %s259, 256, 256, 16
        $region40: #{tpu_custom_call.1} parent=27 // pred_fallthru
          _
      $region28: #{tpu_custom_call.1} parent=5 // pred_fallthru
        _
      %p281 = scmp.le.s32.totalorder 2, %s22
      // Predicated region
      $region41: #{tpu_custom_call.1} parent=5 // pred_check
        %p282 = pneg %p281
      $region42: #{tpu_custom_call.1} parent=5 // pred_check_branch
        %284 = sbr.rel (%p282) target = $region44
      $region43: #{tpu_custom_call.1} parent=5 // pred_region
        %s285 = ssub.s32 %s22, 2
        // Predicated region
        $region45: #{tpu_custom_call.1} parent=43 // pred_check
          %p286 = pneg %p121
        $region46: #{tpu_custom_call.1} parent=43 // pred_check_branch
          %288 = sbr.rel (%p286) target = $region48
        $region47: #{tpu_custom_call.1} parent=43 // pred_region
          %s289 = sand.u32 %s106, 1
          %s290 = scalar_lea.sflag [#allocation6], %s289
          %s291 = sand.u32 %s106, 1
          %s292 = smul.addr %s291, 80
          %s293 = scalar_lea.vmem [#allocation9], %s292
          %294 = dma.done %s290, 1280
        $region48: #{tpu_custom_call.1} parent=43 // pred_fallthru
          _
      $region44: #{tpu_custom_call.1} parent=5 // pred_fallthru
        _
    $region6: #{tpu_custom_call.1} parent=1 // loop_footer
      %s26 = sadd.s32 1, %s22
    $region7: #{tpu_custom_call.1} parent=1 // loop_footer_branch
      %21 = sbr.rel target = $region3
    $region8: #{tpu_custom_call.1} parent=1 // loop_exit
      _
    %295 = vsyncpa [#allocation5], 1
    %s296 = scalar_lea.sflag [#allocation5], 1
    %297 = vsyncpa %s296, 1
    %298 = vsyncpa [#allocation8], 1
    %s299 = scalar_lea.sflag [#allocation8], 1
    %300 = vsyncpa %s299, 1
    %301 = vsyncpa [#allocation6], 1
    %s302 = scalar_lea.sflag [#allocation6], 1
    %303 = vsyncpa %s302, 1

</llo_original>
